<compile_context>
chip_gen: v5e
topology: v5e:2x2
jax: 0.10.0
libtpu: 0.0.40
codegen_flags: <defaults>
</compile_context>

<pallas_src>
import functools
import jax
import jax.numpy as jnp
import numpy as np
from jax.experimental import pallas as pl
from jax.experimental.pallas import tpu as pltpu

# Small, shape-consistent configuration.
BATCH = 2
SEQ = 8
D_MODEL = 32
HEAD_NUM = 4
LN_EPS = 1e-5


def _tensorcores_per_chip():
    """Best-effort detection: v5e/v6e expose one TensorCore per chip, v7x two.
    Unknown chips default to keeping the batch on the (parallel) grid axis."""
    try:
        kind = jax.devices()[0].device_kind.lower()
    except Exception:
        return 2
    if any(tag in kind for tag in ("v5 lite", "v5e", "v6 lite", "v6e")):
        return 1
    return 2


def _layer_norm(h, gamma, beta):
    """f32 LayerNorm; gamma/beta are pre-broadcast to h.shape."""
    mean = jnp.mean(h, axis=-1, keepdims=True)
    var = jnp.mean(jnp.square(h - mean), axis=-1, keepdims=True)
    return (h - mean) * jax.lax.rsqrt(var + LN_EPS) * gamma + beta


def sab_kernel(x_ref, wqkv_ref, bqkv_ref, wo_ref, bo_ref, wff_ref, bff_ref,
               gamma_ref, beta_ref, o_ref, att_scr):
    """Processes a (bb, N, D) batch block per grid step.

    bb == 1 on multi-TC chips (batch -> parallel grid axis across TensorCores) and
    bb == B on single-TC chips (batch folded; the loop below is a static unroll the
    VLIW scheduler can interleave)."""
    bb, n, d = x_ref.shape
    hd = d // HEAD_NUM
    scale = float(1.0 / np.sqrt(hd))

    dg = functools.partial(jax.lax.dot_general,
                           preferred_element_type=jnp.float32)
    dn_nt = (((1,), (0,)), ((), ()))   # plain  A @ B
    dn_tt = (((1,), (1,)), ((), ()))   # A @ B.T without materializing the transpose

    # Hoisted loads / broadcasts (JAX does not CSE broadcast_in_dim; each of these is
    # reused bb times, and gamma/beta twice per batch element).
    wqkv = wqkv_ref[...]                                  # (D, 3D) bf16
    wo = wo_ref[...]                                      # (D, D)  bf16
    wff = wff_ref[...]                                    # (D, D)  bf16
    bqkv = jnp.broadcast_to(bqkv_ref[...], (n, 3 * d))    # f32
    bo = jnp.broadcast_to(bo_ref[...], (n, d))
    bff = jnp.broadcast_to(bff_ref[...], (n, d))
    gamma = jnp.broadcast_to(gamma_ref[...], (n, d))
    beta = jnp.broadcast_to(beta_ref[...], (n, d))

    for b in range(bb):                                   # static, unrolled at trace time
        x = x_ref[b]                                      # (N, D) f32

        # Fused Q|K|V projection: one (N, D) @ (D, 3D) MXU pass + one bias add.
        qkv = dg(x.astype(jnp.bfloat16), wqkv, dn_nt) + bqkv    # (N, 3D) f32

        # Per-head scaled-dot-product attention. Head outputs are written directly into
        # the (N, D) VMEM scratch (no jnp.concatenate of 8-lane chunks, no kh.T relayout).
        for h in range(HEAD_NUM):
            lo = h * hd
            qh = qkv[:, lo:lo + hd].astype(jnp.bfloat16)             # (N, hd)
            kh = qkv[:, d + lo:d + lo + hd].astype(jnp.bfloat16)     # (N, hd)
            vh = qkv[:, 2 * d + lo:2 * d + lo + hd].astype(jnp.bfloat16)
            s = dg(qh, kh, dn_tt) * scale                            # (N, N) f32
            s = s - jnp.max(s, axis=-1, keepdims=True)
            p = jnp.exp(s)
            p = p * pl.reciprocal(jnp.sum(p, axis=-1, keepdims=True), approx=True)
            att_scr[:, lo:lo + hd] = dg(p.astype(jnp.bfloat16), vh, dn_nt)

        # Output projection + residual, then the two LayerNorm / ff stages.
        att = dg(att_scr[...].astype(jnp.bfloat16), wo, dn_nt) + bo

        hidden = att + x
        hidden = _layer_norm(hidden, gamma, beta)
        hidden = hidden + dg(hidden.astype(jnp.bfloat16), wff, dn_nt) + bff
        hidden = _layer_norm(hidden, gamma, beta)

        o_ref[b] = hidden.astype(o_ref.dtype)


def fuse_params(p):
    """One-time, host-side parameter prep: fuse Q|K|V into one (D, 3D) weight and cast
    every matmul weight operand to bf16 (native MXU path); biases and LayerNorm params
    stay f32 (applied after the f32 accumulation)."""
    return {
        "wqkv": jnp.concatenate([p["wq"], p["wk"], p["wv"]], axis=1).astype(jnp.bfloat16),
        "bqkv": jnp.concatenate([p["bq"], p["bk"], p["bv"]], axis=1),
        "wo": p["wo"].astype(jnp.bfloat16), "bo": p["bo"],
        "wff": p["wff"].astype(jnp.bfloat16), "bff": p["bff"],
        "gamma": p["gamma"], "beta": p["beta"],
    }


def sab_forward(x, fp):
    B, N, D = x.shape

    # Per-generation batch handling: fold the batch into one grid step on single-TC
    # chips (v5e/v6e); keep it as a parallel grid axis on multi-TC chips (v7x).
    bb = B if _tensorcores_per_chip() == 1 else 1
    grid = (B // bb,)

    act_spec = pl.BlockSpec((bb, N, D), lambda b: (b, 0, 0))
    full = lambda shape: pl.BlockSpec(shape, lambda b: (0, 0))

    return pl.pallas_call(
        sab_kernel,
        out_shape=jax.ShapeDtypeStruct((B, N, D), x.dtype),
        grid=grid,
        in_specs=[
            act_spec,
            full((D, 3 * D)), full((1, 3 * D)),   # wqkv, bqkv
            full((D, D)), full((1, D)),           # wo, bo
            full((D, D)), full((1, D)),           # wff, bff
            full((1, D)), full((1, D)),           # gamma, beta
        ],
        out_specs=act_spec,
        scratch_shapes=[pltpu.VMEM((N, D), jnp.float32)],
        compiler_params=pltpu.CompilerParams(dimension_semantics=("parallel",)),
    )(x, fp["wqkv"], fp["bqkv"], fp["wo"], fp["bo"], fp["wff"], fp["bff"],
      fp["gamma"], fp["beta"])


def sab_reference(x, p):
    """Pure-JAX, full-f32 reference (SAB == MAB(X, X)) for validation."""
    hp = jax.lax.Precision.HIGHEST
    lin = lambda a, w, b: jnp.einsum("bnd,de->bne", a, w, precision=hp) + b

    q = lin(x, p["wq"], p["bq"])
    k = lin(x, p["wk"], p["bk"])
    v = lin(x, p["wv"], p["bv"])
    B, N, D = q.shape
    hd = D // HEAD_NUM
    qh = q.reshape(B, N, HEAD_NUM, hd).transpose(0, 2, 1, 3)
    kh = k.reshape(B, N, HEAD_NUM, hd).transpose(0, 2, 1, 3)
    vh = v.reshape(B, N, HEAD_NUM, hd).transpose(0, 2, 1, 3)
    s = jnp.einsum("bhnd,bhmd->bhnm", qh, kh, precision=hp) / np.sqrt(hd)
    a = jax.nn.softmax(s, axis=-1)
    o = jnp.einsum("bhnm,bhmd->bhnd", a, vh, precision=hp)
    o = o.transpose(0, 2, 1, 3).reshape(B, N, D)
    att = lin(o, p["wo"], p["bo"])

    def ln(h):
        mu = h.mean(-1, keepdims=True)
        var = ((h - mu) ** 2).mean(-1, keepdims=True)
        return (h - mu) / jnp.sqrt(var + LN_EPS) * p["gamma"] + p["beta"]

    H = ln(att + x)
    H = ln(H + lin(H, p["wff"], p["bff"]))
    return H


def init_params(key, d):
    ks = jax.random.split(key, 10)
    scale = 1.0 / np.sqrt(d)
    mk_w = lambda k: (jax.random.uniform(k, (d, d), jnp.float32, -1.0, 1.0) * scale)
    mk_b = lambda k: (jax.random.uniform(k, (1, d), jnp.float32, -1.0, 1.0) * scale)
    return {
        "wq": mk_w(ks[0]), "bq": mk_b(ks[1]),
        "wk": mk_w(ks[2]), "bk": mk_b(ks[3]),
        "wv": mk_w(ks[4]), "bv": mk_b(ks[5]),
        "wo": mk_w(ks[6]), "bo": mk_b(ks[7]),
        "wff": mk_w(ks[8]), "bff": mk_b(ks[9]),
        "gamma": jnp.ones((1, d), jnp.float32),
        "beta": jnp.zeros((1, d), jnp.float32),
        # TODO(synk): `remap` Linear (dk->dv) exists in MAB.__init__ but is unused in forward.
    }


if __name__ == "__main__":
    key = jax.random.PRNGKey(0)
    kx, kp = jax.random.split(key)

    x = jax.random.normal(kx, (BATCH, SEQ, D_MODEL), jnp.float32)
    params = init_params(kp, D_MODEL)
    fused = fuse_params(params)

    out = jax.block_until_ready(sab_forward(x, fused))
    ref = jax.block_until_ready(sab_reference(x, params))

    assert out.shape == (BATCH, SEQ, D_MODEL)
    # bf16 MXU inputs with f32 accumulation vs. a full-f32 reference: mixed-precision
    # tolerance (final outputs are O(1) after the last LayerNorm).
    assert np.allclose(np.asarray(out), np.asarray(ref), atol=3e-2, rtol=3e-2), (
        "Pallas output mismatch vs reference")
    print("KERNEL_OK")
</pallas_src>

<mosaic_0001>
module attributes {stable_mosaic.version = 11 : i64} {
  func.func @sab_kernel(%arg0: i32, %arg1: memref<1x8x32xf32, #tpu.memory_space<vmem>>, %arg2: memref<32x96xbf16, #tpu.memory_space<vmem>>, %arg3: memref<1x96xf32, #tpu.memory_space<vmem>>, %arg4: memref<32x32xbf16, #tpu.memory_space<vmem>>, %arg5: memref<1x32xf32, #tpu.memory_space<vmem>>, %arg6: memref<32x32xbf16, #tpu.memory_space<vmem>>, %arg7: memref<1x32xf32, #tpu.memory_space<vmem>>, %arg8: memref<1x32xf32, #tpu.memory_space<vmem>>, %arg9: memref<1x32xf32, #tpu.memory_space<vmem>>, %arg10: memref<1x8x32xf32, #tpu.memory_space<vmem>>, %arg11: memref<8x32xf32, #tpu.memory_space<vmem>>) attributes {dimension_semantics = [#tpu.dimension_semantics<parallel>], iteration_bounds = array<i64: 2>, scalar_prefetch = 0 : i64, scratch_operands = 1 : i64, tpu.core_type = #tpu.core_type<tc>, window_params = [{transform_indices = @transform_0, window_bounds = array<i64: 1, 8, 32>}, {pipeline_mode = #tpu.pipeline_mode<synchronous>, transform_indices = @transform_1, window_bounds = array<i64: 32, 96>}, {pipeline_mode = #tpu.pipeline_mode<synchronous>, transform_indices = @transform_2, window_bounds = array<i64: 1, 96>}, {pipeline_mode = #tpu.pipeline_mode<synchronous>, transform_indices = @transform_3, window_bounds = array<i64: 32, 32>}, {pipeline_mode = #tpu.pipeline_mode<synchronous>, transform_indices = @transform_4, window_bounds = array<i64: 1, 32>}, {pipeline_mode = #tpu.pipeline_mode<synchronous>, transform_indices = @transform_5, window_bounds = array<i64: 32, 32>}, {pipeline_mode = #tpu.pipeline_mode<synchronous>, transform_indices = @transform_6, window_bounds = array<i64: 1, 32>}, {pipeline_mode = #tpu.pipeline_mode<synchronous>, transform_indices = @transform_7, window_bounds = array<i64: 1, 32>}, {pipeline_mode = #tpu.pipeline_mode<synchronous>, transform_indices = @transform_8, window_bounds = array<i64: 1, 32>}, {transform_indices = @transform_9, window_bounds = array<i64: 1, 8, 32>}]} {
    %c0 = arith.constant 0 : index
    %c0_0 = arith.constant 0 : index
    %0 = vector.load %arg2[%c0, %c0_0] : memref<32x96xbf16, #tpu.memory_space<vmem>>, vector<32x96xbf16>
    %c0_1 = arith.constant 0 : index
    %c0_2 = arith.constant 0 : index
    %1 = vector.load %arg4[%c0_1, %c0_2] : memref<32x32xbf16, #tpu.memory_space<vmem>>, vector<32x32xbf16>
    %c0_3 = arith.constant 0 : index
    %c0_4 = arith.constant 0 : index
    %2 = vector.load %arg6[%c0_3, %c0_4] : memref<32x32xbf16, #tpu.memory_space<vmem>>, vector<32x32xbf16>
    %c0_5 = arith.constant 0 : index
    %c0_6 = arith.constant 0 : index
    %3 = vector.load %arg3[%c0_5, %c0_6] : memref<1x96xf32, #tpu.memory_space<vmem>>, vector<1x96xf32>
    %4 = vector.shape_cast %3 : vector<1x96xf32> to vector<1x96xf32>
    %5 = vector.broadcast %4 : vector<1x96xf32> to vector<8x96xf32>
    %c0_7 = arith.constant 0 : index
    %c0_8 = arith.constant 0 : index
    %6 = vector.load %arg5[%c0_7, %c0_8] : memref<1x32xf32, #tpu.memory_space<vmem>>, vector<1x32xf32>
    %7 = vector.shape_cast %6 : vector<1x32xf32> to vector<1x32xf32>
    %8 = vector.broadcast %7 : vector<1x32xf32> to vector<8x32xf32>
    %c0_9 = arith.constant 0 : index
    %c0_10 = arith.constant 0 : index
    %9 = vector.load %arg7[%c0_9, %c0_10] : memref<1x32xf32, #tpu.memory_space<vmem>>, vector<1x32xf32>
    %10 = vector.shape_cast %9 : vector<1x32xf32> to vector<1x32xf32>
    %11 = vector.broadcast %10 : vector<1x32xf32> to vector<8x32xf32>
    %c0_11 = arith.constant 0 : index
    %c0_12 = arith.constant 0 : index
    %12 = vector.load %arg8[%c0_11, %c0_12] : memref<1x32xf32, #tpu.memory_space<vmem>>, vector<1x32xf32>
    %13 = vector.shape_cast %12 : vector<1x32xf32> to vector<1x32xf32>
    %14 = vector.broadcast %13 : vector<1x32xf32> to vector<8x32xf32>
    %c0_13 = arith.constant 0 : index
    %c0_14 = arith.constant 0 : index
    %15 = vector.load %arg9[%c0_13, %c0_14] : memref<1x32xf32, #tpu.memory_space<vmem>>, vector<1x32xf32>
    %16 = vector.shape_cast %15 : vector<1x32xf32> to vector<1x32xf32>
    %17 = vector.broadcast %16 : vector<1x32xf32> to vector<8x32xf32>
    %c0_15 = arith.constant 0 : index
    %c0_16 = arith.constant 0 : index
    %c0_17 = arith.constant 0 : index
    %18 = vector.load %arg1[%c0_15, %c0_16, %c0_17] : memref<1x8x32xf32, #tpu.memory_space<vmem>>, vector<1x8x32xf32>
    %19 = vector.shape_cast %18 : vector<1x8x32xf32> to vector<8x32xf32>
    %20 = arith.truncf %19 : vector<8x32xf32> to vector<8x32xbf16>
    %cst = arith.constant dense<0.000000e+00> : vector<8x96xf32>
    %21 = tpu.matmul %20, %0, %cst {dimension_numbers = #tpu.dot_dimension_numbers<[1], [0], [0], [1], [0, 0, 1, 1], [], []>} : vector<8x32xbf16>, vector<32x96xbf16>, vector<8x96xf32> -> vector<8x96xf32>
    %22 = arith.addf %21, %5 : vector<8x96xf32>
    %23 = vector.extract_strided_slice %22 {offsets = [0, 0], sizes = [8, 8], strides = [1, 1]} : vector<8x96xf32> to vector<8x8xf32>
    %24 = arith.truncf %23 : vector<8x8xf32> to vector<8x8xbf16>
    %25 = vector.extract_strided_slice %22 {offsets = [0, 32], sizes = [8, 8], strides = [1, 1]} : vector<8x96xf32> to vector<8x8xf32>
    %26 = arith.truncf %25 : vector<8x8xf32> to vector<8x8xbf16>
    %27 = vector.extract_strided_slice %22 {offsets = [0, 64], sizes = [8, 8], strides = [1, 1]} : vector<8x96xf32> to vector<8x8xf32>
    %28 = arith.truncf %27 : vector<8x8xf32> to vector<8x8xbf16>
    %cst_18 = arith.constant dense<0.000000e+00> : vector<8x8xf32>
    %29 = tpu.matmul %24, %26, %cst_18 {dimension_numbers = #tpu.dot_dimension_numbers<[1], [1], [0], [0], [0, 0, 1, 0], [], []>} : vector<8x8xbf16>, vector<8x8xbf16>, vector<8x8xf32> -> vector<8x8xf32>
    %cst_19 = arith.constant 0.353553385 : f32
    %30 = vector.broadcast %cst_19 : f32 to vector<8x8xf32>
    %31 = arith.mulf %29, %30 : vector<8x8xf32>
    %cst_20 = arith.constant dense<0xFF800000> : vector<8xf32>
    %32 = vector.multi_reduction <maximumf>, %31, %cst_20 [1] : vector<8x8xf32> to vector<8xf32>
    %33 = vector.shape_cast %32 : vector<8xf32> to vector<8x1xf32>
    %34 = vector.broadcast %33 : vector<8x1xf32> to vector<8x8xf32>
    %35 = arith.subf %31, %34 : vector<8x8xf32>
    %36 = math.exp %35 : vector<8x8xf32>
    %cst_21 = arith.constant dense<0.000000e+00> : vector<8xf32>
    %37 = vector.multi_reduction <add>, %36, %cst_21 [1] : vector<8x8xf32> to vector<8xf32>
    %38 = vector.shape_cast %37 : vector<8xf32> to vector<8x1xf32>
    %39 = tpu.reciprocal %38 {approx = true} : vector<8x1xf32> -> vector<8x1xf32>
    %40 = vector.broadcast %39 : vector<8x1xf32> to vector<8x8xf32>
    %41 = arith.mulf %36, %40 : vector<8x8xf32>
    %42 = arith.truncf %41 : vector<8x8xf32> to vector<8x8xbf16>
    %cst_22 = arith.constant dense<0.000000e+00> : vector<8x8xf32>
    %43 = tpu.matmul %42, %28, %cst_22 {dimension_numbers = #tpu.dot_dimension_numbers<[1], [0], [0], [1], [0, 0, 1, 1], [], []>} : vector<8x8xbf16>, vector<8x8xbf16>, vector<8x8xf32> -> vector<8x8xf32>
    %c0_23 = arith.constant 0 : index
    %c0_24 = arith.constant 0 : index
    %44 = vector.load %arg11[%c0_23, %c0_24] : memref<8x32xf32, #tpu.memory_space<vmem>>, vector<8x8xf32>
    tpu.vector_store %arg11[%c0_23, %c0_24], %43 {strides = array<i32>} : memref<8x32xf32, #tpu.memory_space<vmem>>, vector<8x8xf32>,
    %45 = vector.extract_strided_slice %22 {offsets = [0, 8], sizes = [8, 8], strides = [1, 1]} : vector<8x96xf32> to vector<8x8xf32>
    %46 = arith.truncf %45 : vector<8x8xf32> to vector<8x8xbf16>
    %47 = vector.extract_strided_slice %22 {offsets = [0, 40], sizes = [8, 8], strides = [1, 1]} : vector<8x96xf32> to vector<8x8xf32>
    %48 = arith.truncf %47 : vector<8x8xf32> to vector<8x8xbf16>
    %49 = vector.extract_strided_slice %22 {offsets = [0, 72], sizes = [8, 8], strides = [1, 1]} : vector<8x96xf32> to vector<8x8xf32>
    %50 = arith.truncf %49 : vector<8x8xf32> to vector<8x8xbf16>
    %cst_25 = arith.constant dense<0.000000e+00> : vector<8x8xf32>
    %51 = tpu.matmul %46, %48, %cst_25 {dimension_numbers = #tpu.dot_dimension_numbers<[1], [1], [0], [0], [0, 0, 1, 0], [], []>} : vector<8x8xbf16>, vector<8x8xbf16>, vector<8x8xf32> -> vector<8x8xf32>
    %cst_26 = arith.constant 0.353553385 : f32
    %52 = vector.broadcast %cst_26 : f32 to vector<8x8xf32>
    %53 = arith.mulf %51, %52 : vector<8x8xf32>
    %cst_27 = arith.constant dense<0xFF800000> : vector<8xf32>
    %54 = vector.multi_reduction <maximumf>, %53, %cst_27 [1] : vector<8x8xf32> to vector<8xf32>
    %55 = vector.shape_cast %54 : vector<8xf32> to vector<8x1xf32>
    %56 = vector.broadcast %55 : vector<8x1xf32> to vector<8x8xf32>
    %57 = arith.subf %53, %56 : vector<8x8xf32>
    %58 = math.exp %57 : vector<8x8xf32>
    %cst_28 = arith.constant dense<0.000000e+00> : vector<8xf32>
    %59 = vector.multi_reduction <add>, %58, %cst_28 [1] : vector<8x8xf32> to vector<8xf32>
    %60 = vector.shape_cast %59 : vector<8xf32> to vector<8x1xf32>
    %61 = tpu.reciprocal %60 {approx = true} : vector<8x1xf32> -> vector<8x1xf32>
    %62 = vector.broadcast %61 : vector<8x1xf32> to vector<8x8xf32>
    %63 = arith.mulf %58, %62 : vector<8x8xf32>
    %64 = arith.truncf %63 : vector<8x8xf32> to vector<8x8xbf16>
    %cst_29 = arith.constant dense<0.000000e+00> : vector<8x8xf32>
    %65 = tpu.matmul %64, %50, %cst_29 {dimension_numbers = #tpu.dot_dimension_numbers<[1], [0], [0], [1], [0, 0, 1, 1], [], []>} : vector<8x8xbf16>, vector<8x8xbf16>, vector<8x8xf32> -> vector<8x8xf32>
    %c0_30 = arith.constant 0 : index
    %c8 = arith.constant 8 : index
    %66 = vector.load %arg11[%c0_30, %c8] : memref<8x32xf32, #tpu.memory_space<vmem>>, vector<8x8xf32>
    tpu.vector_store %arg11[%c0_30, %c8], %65 {strides = array<i32>} : memref<8x32xf32, #tpu.memory_space<vmem>>, vector<8x8xf32>,
    %67 = vector.extract_strided_slice %22 {offsets = [0, 16], sizes = [8, 8], strides = [1, 1]} : vector<8x96xf32> to vector<8x8xf32>
    %68 = arith.truncf %67 : vector<8x8xf32> to vector<8x8xbf16>
    %69 = vector.extract_strided_slice %22 {offsets = [0, 48], sizes = [8, 8], strides = [1, 1]} : vector<8x96xf32> to vector<8x8xf32>
    %70 = arith.truncf %69 : vector<8x8xf32> to vector<8x8xbf16>
    %71 = vector.extract_strided_slice %22 {offsets = [0, 80], sizes = [8, 8], strides = [1, 1]} : vector<8x96xf32> to vector<8x8xf32>
    %72 = arith.truncf %71 : vector<8x8xf32> to vector<8x8xbf16>
    %cst_31 = arith.constant dense<0.000000e+00> : vector<8x8xf32>
    %73 = tpu.matmul %68, %70, %cst_31 {dimension_numbers = #tpu.dot_dimension_numbers<[1], [1], [0], [0], [0, 0, 1, 0], [], []>} : vector<8x8xbf16>, vector<8x8xbf16>, vector<8x8xf32> -> vector<8x8xf32>
    %cst_32 = arith.constant 0.353553385 : f32
    %74 = vector.broadcast %cst_32 : f32 to vector<8x8xf32>
    %75 = arith.mulf %73, %74 : vector<8x8xf32>
    %cst_33 = arith.constant dense<0xFF800000> : vector<8xf32>
    %76 = vector.multi_reduction <maximumf>, %75, %cst_33 [1] : vector<8x8xf32> to vector<8xf32>
    %77 = vector.shape_cast %76 : vector<8xf32> to vector<8x1xf32>
    %78 = vector.broadcast %77 : vector<8x1xf32> to vector<8x8xf32>
    %79 = arith.subf %75, %78 : vector<8x8xf32>
    %80 = math.exp %79 : vector<8x8xf32>
    %cst_34 = arith.constant dense<0.000000e+00> : vector<8xf32>
    %81 = vector.multi_reduction <add>, %80, %cst_34 [1] : vector<8x8xf32> to vector<8xf32>
    %82 = vector.shape_cast %81 : vector<8xf32> to vector<8x1xf32>
    %83 = tpu.reciprocal %82 {approx = true} : vector<8x1xf32> -> vector<8x1xf32>
    %84 = vector.broadcast %83 : vector<8x1xf32> to vector<8x8xf32>
    %85 = arith.mulf %80, %84 : vector<8x8xf32>
    %86 = arith.truncf %85 : vector<8x8xf32> to vector<8x8xbf16>
    %cst_35 = arith.constant dense<0.000000e+00> : vector<8x8xf32>
    %87 = tpu.matmul %86, %72, %cst_35 {dimension_numbers = #tpu.dot_dimension_numbers<[1], [0], [0], [1], [0, 0, 1, 1], [], []>} : vector<8x8xbf16>, vector<8x8xbf16>, vector<8x8xf32> -> vector<8x8xf32>
    %c0_36 = arith.constant 0 : index
    %c16 = arith.constant 16 : index
    %88 = vector.load %arg11[%c0_36, %c16] : memref<8x32xf32, #tpu.memory_space<vmem>>, vector<8x8xf32>
    tpu.vector_store %arg11[%c0_36, %c16], %87 {strides = array<i32>} : memref<8x32xf32, #tpu.memory_space<vmem>>, vector<8x8xf32>,
    %89 = vector.extract_strided_slice %22 {offsets = [0, 24], sizes = [8, 8], strides = [1, 1]} : vector<8x96xf32> to vector<8x8xf32>
    %90 = arith.truncf %89 : vector<8x8xf32> to vector<8x8xbf16>
    %91 = vector.extract_strided_slice %22 {offsets = [0, 56], sizes = [8, 8], strides = [1, 1]} : vector<8x96xf32> to vector<8x8xf32>
    %92 = arith.truncf %91 : vector<8x8xf32> to vector<8x8xbf16>
    %93 = vector.extract_strided_slice %22 {offsets = [0, 88], sizes = [8, 8], strides = [1, 1]} : vector<8x96xf32> to vector<8x8xf32>
    %94 = arith.truncf %93 : vector<8x8xf32> to vector<8x8xbf16>
    %cst_37 = arith.constant dense<0.000000e+00> : vector<8x8xf32>
    %95 = tpu.matmul %90, %92, %cst_37 {dimension_numbers = #tpu.dot_dimension_numbers<[1], [1], [0], [0], [0, 0, 1, 0], [], []>} : vector<8x8xbf16>, vector<8x8xbf16>, vector<8x8xf32> -> vector<8x8xf32>
    %cst_38 = arith.constant 0.353553385 : f32
    %96 = vector.broadcast %cst_38 : f32 to vector<8x8xf32>
    %97 = arith.mulf %95, %96 : vector<8x8xf32>
    %cst_39 = arith.constant dense<0xFF800000> : vector<8xf32>
    %98 = vector.multi_reduction <maximumf>, %97, %cst_39 [1] : vector<8x8xf32> to vector<8xf32>
    %99 = vector.shape_cast %98 : vector<8xf32> to vector<8x1xf32>
    %100 = vector.broadcast %99 : vector<8x1xf32> to vector<8x8xf32>
    %101 = arith.subf %97, %100 : vector<8x8xf32>
    %102 = math.exp %101 : vector<8x8xf32>
    %cst_40 = arith.constant dense<0.000000e+00> : vector<8xf32>
    %103 = vector.multi_reduction <add>, %102, %cst_40 [1] : vector<8x8xf32> to vector<8xf32>
    %104 = vector.shape_cast %103 : vector<8xf32> to vector<8x1xf32>
    %105 = tpu.reciprocal %104 {approx = true} : vector<8x1xf32> -> vector<8x1xf32>
    %106 = vector.broadcast %105 : vector<8x1xf32> to vector<8x8xf32>
    %107 = arith.mulf %102, %106 : vector<8x8xf32>
    %108 = arith.truncf %107 : vector<8x8xf32> to vector<8x8xbf16>
    %cst_41 = arith.constant dense<0.000000e+00> : vector<8x8xf32>
    %109 = tpu.matmul %108, %94, %cst_41 {dimension_numbers = #tpu.dot_dimension_numbers<[1], [0], [0], [1], [0, 0, 1, 1], [], []>} : vector<8x8xbf16>, vector<8x8xbf16>, vector<8x8xf32> -> vector<8x8xf32>
    %c0_42 = arith.constant 0 : index
    %c24 = arith.constant 24 : index
    %110 = vector.load %arg11[%c0_42, %c24] : memref<8x32xf32, #tpu.memory_space<vmem>>, vector<8x8xf32>
    tpu.vector_store %arg11[%c0_42, %c24], %109 {strides = array<i32>} : memref<8x32xf32, #tpu.memory_space<vmem>>, vector<8x8xf32>,
    %c0_43 = arith.constant 0 : index
    %c0_44 = arith.constant 0 : index
    %111 = vector.load %arg11[%c0_43, %c0_44] : memref<8x32xf32, #tpu.memory_space<vmem>>, vector<8x32xf32>
    %112 = arith.truncf %111 : vector<8x32xf32> to vector<8x32xbf16>
    %cst_45 = arith.constant dense<0.000000e+00> : vector<8x32xf32>
    %113 = tpu.matmul %112, %1, %cst_45 {dimension_numbers = #tpu.dot_dimension_numbers<[1], [0], [0], [1], [0, 0, 1, 1], [], []>} : vector<8x32xbf16>, vector<32x32xbf16>, vector<8x32xf32> -> vector<8x32xf32>
    %114 = arith.addf %113, %8 : vector<8x32xf32>
    %115 = arith.addf %114, %19 : vector<8x32xf32>
    %cst_46 = arith.constant dense<0.000000e+00> : vector<8xf32>
    %116 = vector.multi_reduction <add>, %115, %cst_46 [1] : vector<8x32xf32> to vector<8xf32>
    %117 = vector.shape_cast %116 : vector<8xf32> to vector<8x1xf32>
    %cst_47 = arith.constant 3.200000e+01 : f32
    %118 = vector.broadcast %cst_47 : f32 to vector<8x1xf32>
    %119 = arith.divf %117, %118 : vector<8x1xf32>
    %120 = vector.broadcast %119 : vector<8x1xf32> to vector<8x32xf32>
    %121 = arith.subf %115, %120 : vector<8x32xf32>
    %122 = arith.mulf %121, %121 : vector<8x32xf32>
    %cst_48 = arith.constant dense<0.000000e+00> : vector<8xf32>
    %123 = vector.multi_reduction <add>, %122, %cst_48 [1] : vector<8x32xf32> to vector<8xf32>
    %124 = vector.shape_cast %123 : vector<8xf32> to vector<8x1xf32>
    %cst_49 = arith.constant 3.200000e+01 : f32
    %125 = vector.broadcast %cst_49 : f32 to vector<8x1xf32>
    %126 = arith.divf %124, %125 : vector<8x1xf32>
    %127 = vector.broadcast %119 : vector<8x1xf32> to vector<8x32xf32>
    %128 = arith.subf %115, %127 : vector<8x32xf32>
    %cst_50 = arith.constant 9.99999974E-6 : f32
    %129 = vector.broadcast %cst_50 : f32 to vector<8x1xf32>
    %130 = arith.addf %126, %129 : vector<8x1xf32>
    %131 = math.rsqrt %130 : vector<8x1xf32>
    %132 = vector.broadcast %131 : vector<8x1xf32> to vector<8x32xf32>
    %133 = arith.mulf %128, %132 : vector<8x32xf32>
    %134 = arith.mulf %133, %14 : vector<8x32xf32>
    %135 = arith.addf %134, %17 : vector<8x32xf32>
    %136 = arith.truncf %135 : vector<8x32xf32> to vector<8x32xbf16>
    %cst_51 = arith.constant dense<0.000000e+00> : vector<8x32xf32>
    %137 = tpu.matmul %136, %2, %cst_51 {dimension_numbers = #tpu.dot_dimension_numbers<[1], [0], [0], [1], [0, 0, 1, 1], [], []>} : vector<8x32xbf16>, vector<32x32xbf16>, vector<8x32xf32> -> vector<8x32xf32>
    %138 = arith.addf %135, %137 : vector<8x32xf32>
    %139 = arith.addf %138, %11 : vector<8x32xf32>
    %cst_52 = arith.constant dense<0.000000e+00> : vector<8xf32>
    %140 = vector.multi_reduction <add>, %139, %cst_52 [1] : vector<8x32xf32> to vector<8xf32>
    %141 = vector.shape_cast %140 : vector<8xf32> to vector<8x1xf32>
    %cst_53 = arith.constant 3.200000e+01 : f32
    %142 = vector.broadcast %cst_53 : f32 to vector<8x1xf32>
    %143 = arith.divf %141, %142 : vector<8x1xf32>
    %144 = vector.broadcast %143 : vector<8x1xf32> to vector<8x32xf32>
    %145 = arith.subf %139, %144 : vector<8x32xf32>
    %146 = arith.mulf %145, %145 : vector<8x32xf32>
    %cst_54 = arith.constant dense<0.000000e+00> : vector<8xf32>
    %147 = vector.multi_reduction <add>, %146, %cst_54 [1] : vector<8x32xf32> to vector<8xf32>
    %148 = vector.shape_cast %147 : vector<8xf32> to vector<8x1xf32>
    %cst_55 = arith.constant 3.200000e+01 : f32
    %149 = vector.broadcast %cst_55 : f32 to vector<8x1xf32>
    %150 = arith.divf %148, %149 : vector<8x1xf32>
    %151 = vector.broadcast %143 : vector<8x1xf32> to vector<8x32xf32>
    %152 = arith.subf %139, %151 : vector<8x32xf32>
    %cst_56 = arith.constant 9.99999974E-6 : f32
    %153 = vector.broadcast %cst_56 : f32 to vector<8x1xf32>
    %154 = arith.addf %150, %153 : vector<8x1xf32>
    %155 = math.rsqrt %154 : vector<8x1xf32>
    %156 = vector.broadcast %155 : vector<8x1xf32> to vector<8x32xf32>
    %157 = arith.mulf %152, %156 : vector<8x32xf32>
    %158 = arith.mulf %157, %14 : vector<8x32xf32>
    %159 = arith.addf %158, %17 : vector<8x32xf32>
    %c0_57 = arith.constant 0 : index
    %c0_58 = arith.constant 0 : index
    %c0_59 = arith.constant 0 : index
    %160 = vector.load %arg10[%c0_57, %c0_58, %c0_59] : memref<1x8x32xf32, #tpu.memory_space<vmem>>, vector<1x8x32xf32>
    %161 = vector.shape_cast %160 : vector<1x8x32xf32> to vector<8x32xf32>
    %162 = vector.shape_cast %159 : vector<8x32xf32> to vector<1x8x32xf32>
    tpu.vector_store %arg10[%c0_57, %c0_58, %c0_59], %162 {strides = array<i32>} : memref<1x8x32xf32, #tpu.memory_space<vmem>>, vector<1x8x32xf32>,
    return
  }
  func.func @transform_0(%arg0: i32) -> (i32, i32, i32) {
    %c0_i32 = arith.constant 0 : i32
    %c0_i32_0 = arith.constant 0 : i32
    %c0_i32_1 = arith.constant 0 : i32
    return %arg0, %c0_i32, %c0_i32_0 : i32, i32, i32
  }
  func.func @transform_1(%arg0: i32) -> (i32, i32) {
    %c0_i32 = arith.constant 0 : i32
    %c0_i32_0 = arith.constant 0 : i32
    %c0_i32_1 = arith.constant 0 : i32
    return %c0_i32, %c0_i32_0 : i32, i32
  }
  func.func @transform_2(%arg0: i32) -> (i32, i32) {
    %c0_i32 = arith.constant 0 : i32
    %c0_i32_0 = arith.constant 0 : i32
    %c0_i32_1 = arith.constant 0 : i32
    return %c0_i32, %c0_i32_0 : i32, i32
  }
  func.func @transform_3(%arg0: i32) -> (i32, i32) {
    %c0_i32 = arith.constant 0 : i32
    %c0_i32_0 = arith.constant 0 : i32
    %c0_i32_1 = arith.constant 0 : i32
    return %c0_i32, %c0_i32_0 : i32, i32
  }
  func.func @transform_4(%arg0: i32) -> (i32, i32) {
    %c0_i32 = arith.constant 0 : i32
    %c0_i32_0 = arith.constant 0 : i32
    %c0_i32_1 = arith.constant 0 : i32
    return %c0_i32, %c0_i32_0 : i32, i32
  }
  func.func @transform_5(%arg0: i32) -> (i32, i32) {
    %c0_i32 = arith.constant 0 : i32
    %c0_i32_0 = arith.constant 0 : i32
    %c0_i32_1 = arith.constant 0 : i32
    return %c0_i32, %c0_i32_0 : i32, i32
  }
  func.func @transform_6(%arg0: i32) -> (i32, i32) {
    %c0_i32 = arith.constant 0 : i32
    %c0_i32_0 = arith.constant 0 : i32
    %c0_i32_1 = arith.constant 0 : i32
    return %c0_i32, %c0_i32_0 : i32, i32
  }
  func.func @transform_7(%arg0: i32) -> (i32, i32) {
    %c0_i32 = arith.constant 0 : i32
    %c0_i32_0 = arith.constant 0 : i32
    %c0_i32_1 = arith.constant 0 : i32
    return %c0_i32, %c0_i32_0 : i32, i32
  }
  func.func @transform_8(%arg0: i32) -> (i32, i32) {
    %c0_i32 = arith.constant 0 : i32
    %c0_i32_0 = arith.constant 0 : i32
    %c0_i32_1 = arith.constant 0 : i32
    return %c0_i32, %c0_i32_0 : i32, i32
  }
  func.func @transform_9(%arg0: i32) -> (i32, i32, i32) {
    %c0_i32 = arith.constant 0 : i32
    %c0_i32_0 = arith.constant 0 : i32
    %c0_i32_1 = arith.constant 0 : i32
    return %arg0, %c0_i32, %c0_i32_0 : i32, i32, i32
  }
}

</mosaic_0001>

<llo_original>
// kernel: tpu_custom_call.1
$region0: #{tpu_custom_call.1}
  #allocation0 [shape = 'u32[]', space=smem, size = 0x4, offset = 0x4, fixed_abs, tag = 'smem constant byte address 0x4 - core index']
  #allocation1 [shape = 'u32[72,128]{1,0:T(1,128)}', space=vmem, size = 0x9000, scoped, tag = 'internal scratch']
  #allocation2 [shape = 'f32[8,32]{1,0:T(8,128)}', space=vmem, size = 0x1000, scoped, tag = 'scratch operand']
  %s0 = inlined_call_operand.hbm [shape: f32[2,8,32], index: 0, kind: input, shape index: {}]
  %s1 = inlined_call_operand.hbm [shape: bf16[32,96], index: 1, kind: input, shape index: {}]
  %s2 = inlined_call_operand.vmem [shape: f32[1,96], index: 2, kind: input, shape index: {}]
  %s3 = inlined_call_operand.hbm [shape: bf16[32,32], index: 3, kind: input, shape index: {}]
  %s4 = inlined_call_operand.vmem [shape: f32[1,32], index: 4, kind: input, shape index: {}]
  %s5 = inlined_call_operand.hbm [shape: bf16[32,32], index: 5, kind: input, shape index: {}]
  %s6 = inlined_call_operand.vmem [shape: f32[1,32], index: 6, kind: input, shape index: {}]
  %s7 = inlined_call_operand.vmem [shape: f32[1,32], index: 7, kind: input, shape index: {}]
  %s8 = inlined_call_operand.vmem [shape: f32[1,32], index: 8, kind: input, shape index: {}]
  %s9 = inlined_call_operand.hbm [shape: f32[2,8,32], index: 9, kind: output, shape index: {}]
  %s10 = sld [smem:[#allocation0]]
  $region85: #{tpu_custom_call.1} parent=0
    _
  %s12 = ssub.s32 1, %s10
  %s13 = scalar_select 0, %s12, %s10
  $region1: #{tpu_custom_call.1} parent=0
    #allocation3 [shape = 'u8[8192]{0}', space=vmem, size = 0x2000, scoped, tag = 'input window, operand 0']
    #allocation4 [shape = 's32[2]{0}', space=sflag, size = 0x8, scoped, tag = 'scoped memory for tpu_custom_call.1']
    #allocation5 [shape = 's32[2]{0}', space=sflag, size = 0x8, scoped, tag = 'scoped memory for tpu_custom_call.1']
    #allocation6 [shape = 'u8[8192]{0}', space=vmem, size = 0x2000, scoped, tag = 'input window, operand 1, single buffered']
    #allocation7 [shape = 's32[1]{0}', space=sflag, size = 0x4, scoped, tag = 'scoped memory for tpu_custom_call.1']
    #allocation8 [shape = 'u8[8192]{0}', space=vmem, size = 0x2000, scoped, tag = 'input window, operand 3, single buffered']
    #allocation9 [shape = 'u8[8192]{0}', space=vmem, size = 0x2000, scoped, tag = 'input window, operand 5, single buffered']
    #allocation10 [shape = 's32[1]{0}', space=sflag, size = 0x4, scoped, tag = 'scoped memory for tpu_custom_call.1']
    #allocation11 [shape = 'u8[8192]{0}', space=vmem, size = 0x2000, scoped, tag = 'output window, operand 0']
    %14 = vsyncpa [#allocation4], 0
    %s15 = scalar_lea.sflag [#allocation4], 1
    %16 = vsyncpa %s15, 0
    %17 = vsyncpa [#allocation7], 0
    %18 = vsyncpa [#allocation10], 0
    %19 = vsyncpa [#allocation5], 0
    %s20 = scalar_lea.sflag [#allocation5], 1
    %21 = vsyncpa %s20, 0
    loop: start=0, step=1, limit=4
    $region2: #{tpu_custom_call.1} parent=1 // loop_pre_header
      _
    $region3: #{tpu_custom_call.1} parent=1 // loop_header
      %s23 = sphi 0, %s27
      %p24 = scmp.ge.s32.totalorder %s23, 4
      %s33 = sphi 0, %s35
      %s36 = sphi 0, %s33
      %s37 = sphi 0, %s36
      %s53 = sphi 0, %s37
      %s57 = sphi 0, %s57
      %s59 = sphi 0, %s57
      %s60 = sphi 0, %s59
      %s74 = sphi 0, %s60
      %s78 = sphi 0, %s78
      %s80 = sphi 0, %s78
      %s81 = sphi 0, %s80
      %s95 = sphi 0, %s81
      %s99 = sphi 0, %s99
      %s101 = sphi 0, %s99
      %s102 = sphi 0, %s101
      %s116 = sphi 0, %s102
      %s120 = sphi 0, %s120
      %s122 = sphi 0, %s120
      %s123 = sphi 0, %s122
      %s137 = sphi 0, %s123
      %s141 = sphi 0, %s141
      %s143 = sphi 0, %s141
      %s144 = sphi 0, %s143
      %s158 = sphi 0, %s144
      %s162 = sphi 0, %s162
      %s164 = sphi 0, %s162
      %s165 = sphi 0, %s164
      %s179 = sphi 0, %s165
      %s183 = sphi 0, %s183
      %s185 = sphi 0, %s183
      %s186 = sphi 0, %s185
      %s200 = sphi 0, %s186
      %s204 = sphi 0, %s204
      %s206 = sphi 0, %s204
      %s207 = sphi 0, %s206
      %s221 = sphi 0, %s207
      %s227 = sphi 0, %s229
      %s230 = sphi 0, %s227
      %s231 = sphi 0, %s230
      %s247 = sphi 0, %s231
    $region4: #{tpu_custom_call.1} parent=1 // loop_header_branch
      %26 = sbr.rel (%p24) target = $region8
    $region5: #{tpu_custom_call.1} parent=1 // loop_body
      %s28 = ssub.s32 %s23, 1
      %s29 = ssub.s32 %s23, 2
      %s30 = sadd.s32 %s23, 1
      %s31 = ssub.s32 %s23, %s30
      %p32 = scmp.eq.s32.totalorder %s31, 0
      %s34 = sadd.s32 %s33, 1
      %s35 = scalar_select %p32, %s33, %s34
      %p38 = pneg %p32
      %p39 = scmp.eq.s32.totalorder %s23, 1
      %p40 = por %p38, %p39
      %p41 = scmp.ne.s32.totalorder %s33, %s36
      %p42 = scmp.eq.s32.totalorder %s23, 0
      %p43 = por %p41, %p42
      %p44 = scmp.ne.s32.totalorder %s33, %s36
      %p45 = scmp.eq.s32.totalorder %s28, 1
      %p46 = por %p44, %p45
      %p47 = scmp.ne.s32.totalorder %s36, %s37
      %p48 = scmp.eq.s32.totalorder %s28, 0
      %p49 = por %p47, %p48
      %p50 = scmp.ne.s32.totalorder %s36, %s37
      %p51 = scmp.eq.s32.totalorder %s29, 1
      %p52 = por %p50, %p51
      %p54 = scmp.ne.s32.totalorder %s37, %s53
      %p55 = scmp.eq.s32.totalorder %s29, 0
      %p56 = por %p54, %p55
      %s58 = sadd.s32 %s57, 1
      %p61 = scmp.eq.s32.totalorder %s23, 1
      %p62 = scmp.ne.s32.totalorder %s57, %s59
      %p63 = scmp.eq.s32.totalorder %s23, 0
      %p64 = por %p62, %p63
      %p65 = scmp.ne.s32.totalorder %s57, %s59
      %p66 = scmp.eq.s32.totalorder %s28, 1
      %p67 = por %p65, %p66
      %p68 = scmp.ne.s32.totalorder %s59, %s60
      %p69 = scmp.eq.s32.totalorder %s28, 0
      %p70 = por %p68, %p69
      %p71 = scmp.ne.s32.totalorder %s59, %s60
      %p72 = scmp.eq.s32.totalorder %s29, 1
      %p73 = por %p71, %p72
      %p75 = scmp.ne.s32.totalorder %s60, %s74
      %p76 = scmp.eq.s32.totalorder %s29, 0
      %p77 = por %p75, %p76
      %s79 = sadd.s32 %s78, 1
      %p82 = scmp.eq.s32.totalorder %s23, 1
      %p83 = scmp.ne.s32.totalorder %s78, %s80
      %p84 = scmp.eq.s32.totalorder %s23, 0
      %p85 = por %p83, %p84
      %p86 = scmp.ne.s32.totalorder %s78, %s80
      %p87 = scmp.eq.s32.totalorder %s28, 1
      %p88 = por %p86, %p87
      %p89 = scmp.ne.s32.totalorder %s80, %s81
      %p90 = scmp.eq.s32.totalorder %s28, 0
      %p91 = por %p89, %p90
      %p92 = scmp.ne.s32.totalorder %s80, %s81
      %p93 = scmp.eq.s32.totalorder %s29, 1
      %p94 = por %p92, %p93
      %p96 = scmp.ne.s32.totalorder %s81, %s95
      %p97 = scmp.eq.s32.totalorder %s29, 0
      %p98 = por %p96, %p97
      %s100 = sadd.s32 %s99, 1
      %p103 = scmp.eq.s32.totalorder %s23, 1
      %p104 = scmp.ne.s32.totalorder %s99, %s101
      %p105 = scmp.eq.s32.totalorder %s23, 0
      %p106 = por %p104, %p105
      %p107 = scmp.ne.s32.totalorder %s99, %s101
      %p108 = scmp.eq.s32.totalorder %s28, 1
      %p109 = por %p107, %p108
      %p110 = scmp.ne.s32.totalorder %s101, %s102
      %p111 = scmp.eq.s32.totalorder %s28, 0
      %p112 = por %p110, %p111
      %p113 = scmp.ne.s32.totalorder %s101, %s102
      %p114 = scmp.eq.s32.totalorder %s29, 1
      %p115 = por %p113, %p114
      %p117 = scmp.ne.s32.totalorder %s102, %s116
      %p118 = scmp.eq.s32.totalorder %s29, 0
      %p119 = por %p117, %p118
      %s121 = sadd.s32 %s120, 1
      %p124 = scmp.eq.s32.totalorder %s23, 1
      %p125 = scmp.ne.s32.totalorder %s120, %s122
      %p126 = scmp.eq.s32.totalorder %s23, 0
      %p127 = por %p125, %p126
      %p128 = scmp.ne.s32.totalorder %s120, %s122
      %p129 = scmp.eq.s32.totalorder %s28, 1
      %p130 = por %p128, %p129
      %p131 = scmp.ne.s32.totalorder %s122, %s123
      %p132 = scmp.eq.s32.totalorder %s28, 0
      %p133 = por %p131, %p132
      %p134 = scmp.ne.s32.totalorder %s122, %s123
      %p135 = scmp.eq.s32.totalorder %s29, 1
      %p136 = por %p134, %p135
      %p138 = scmp.ne.s32.totalorder %s123, %s137
      %p139 = scmp.eq.s32.totalorder %s29, 0
      %p140 = por %p138, %p139
      %s142 = sadd.s32 %s141, 1
      %p145 = scmp.eq.s32.totalorder %s23, 1
      %p146 = scmp.ne.s32.totalorder %s141, %s143
      %p147 = scmp.eq.s32.totalorder %s23, 0
      %p148 = por %p146, %p147
      %p149 = scmp.ne.s32.totalorder %s141, %s143
      %p150 = scmp.eq.s32.totalorder %s28, 1
      %p151 = por %p149, %p150
      %p152 = scmp.ne.s32.totalorder %s143, %s144
      %p153 = scmp.eq.s32.totalorder %s28, 0
      %p154 = por %p152, %p153
      %p155 = scmp.ne.s32.totalorder %s143, %s144
      %p156 = scmp.eq.s32.totalorder %s29, 1
      %p157 = por %p155, %p156
      %p159 = scmp.ne.s32.totalorder %s144, %s158
      %p160 = scmp.eq.s32.totalorder %s29, 0
      %p161 = por %p159, %p160
      %s163 = sadd.s32 %s162, 1
      %p166 = scmp.eq.s32.totalorder %s23, 1
      %p167 = scmp.ne.s32.totalorder %s162, %s164
      %p168 = scmp.eq.s32.totalorder %s23, 0
      %p169 = por %p167, %p168
      %p170 = scmp.ne.s32.totalorder %s162, %s164
      %p171 = scmp.eq.s32.totalorder %s28, 1
      %p172 = por %p170, %p171
      %p173 = scmp.ne.s32.totalorder %s164, %s165
      %p174 = scmp.eq.s32.totalorder %s28, 0
      %p175 = por %p173, %p174
      %p176 = scmp.ne.s32.totalorder %s164, %s165
      %p177 = scmp.eq.s32.totalorder %s29, 1
      %p178 = por %p176, %p177
      %p180 = scmp.ne.s32.totalorder %s165, %s179
      %p181 = scmp.eq.s32.totalorder %s29, 0
      %p182 = por %p180, %p181
      %s184 = sadd.s32 %s183, 1
      %p187 = scmp.eq.s32.totalorder %s23, 1
      %p188 = scmp.ne.s32.totalorder %s183, %s185
      %p189 = scmp.eq.s32.totalorder %s23, 0
      %p190 = por %p188, %p189
      %p191 = scmp.ne.s32.totalorder %s183, %s185
      %p192 = scmp.eq.s32.totalorder %s28, 1
      %p193 = por %p191, %p192
      %p194 = scmp.ne.s32.totalorder %s185, %s186
      %p195 = scmp.eq.s32.totalorder %s28, 0
      %p196 = por %p194, %p195
      %p197 = scmp.ne.s32.totalorder %s185, %s186
      %p198 = scmp.eq.s32.totalorder %s29, 1
      %p199 = por %p197, %p198
      %p201 = scmp.ne.s32.totalorder %s186, %s200
      %p202 = scmp.eq.s32.totalorder %s29, 0
      %p203 = por %p201, %p202
      %s205 = sadd.s32 %s204, 1
      %p208 = scmp.eq.s32.totalorder %s23, 1
      %p209 = scmp.ne.s32.totalorder %s204, %s206
      %p210 = scmp.eq.s32.totalorder %s23, 0
      %p211 = por %p209, %p210
      %p212 = scmp.ne.s32.totalorder %s204, %s206
      %p213 = scmp.eq.s32.totalorder %s28, 1
      %p214 = por %p212, %p213
      %p215 = scmp.ne.s32.totalorder %s206, %s207
      %p216 = scmp.eq.s32.totalorder %s28, 0
      %p217 = por %p215, %p216
      %p218 = scmp.ne.s32.totalorder %s206, %s207
      %p219 = scmp.eq.s32.totalorder %s29, 1
      %p220 = por %p218, %p219
      %p222 = scmp.ne.s32.totalorder %s207, %s221
      %p223 = scmp.eq.s32.totalorder %s29, 0
      %p224 = por %p222, %p223
      %s225 = ssub.s32 %s23, %s30
      %p226 = scmp.eq.s32.totalorder %s225, 0
      %s228 = sadd.s32 %s227, 1
      %s229 = scalar_select %p226, %s227, %s228
      %p232 = pneg %p226
      %p233 = scmp.eq.s32.totalorder %s23, 1
      %p234 = por %p232, %p233
      %p235 = scmp.ne.s32.totalorder %s227, %s230
      %p236 = scmp.eq.s32.totalorder %s23, 0
      %p237 = por %p235, %p236
      %p238 = scmp.ne.s32.totalorder %s227, %s230
      %p239 = scmp.eq.s32.totalorder %s28, 1
      %p240 = por %p238, %p239
      %p241 = scmp.ne.s32.totalorder %s230, %s231
      %p242 = scmp.eq.s32.totalorder %s28, 0
      %p243 = por %p241, %p242
      %p244 = scmp.ne.s32.totalorder %s230, %s231
      %p245 = scmp.eq.s32.totalorder %s29, 1
      %p246 = por %p244, %p245
      %p248 = scmp.ne.s32.totalorder %s231, %s247
      %p249 = scmp.eq.s32.totalorder %s29, 0
      %p250 = por %p248, %p249
      %p251 = scmp.le.s32.totalorder 1, %s23
      %p252 = scmp.lt.s32.totalorder %s23, 3
      %p253 = pnand %p251, %p252
      %p254 = pneg %p253
      // Predicated region
      $region9: #{tpu_custom_call.1} parent=5 // pred_check
        _
      $region10: #{tpu_custom_call.1} parent=5 // pred_check_branch
        %256 = sbr.rel (%p253) target = $region12
      $region11: #{tpu_custom_call.1} parent=5 // pred_region
        %s257 = ssub.s32 %s23, 1
        // Predicated region
        $region13: #{tpu_custom_call.1} parent=11 // pred_check
          %p258 = pneg %p70
        $region14: #{tpu_custom_call.1} parent=11 // pred_check_branch
          %260 = sbr.rel (%p258) target = $region16
        $region15: #{tpu_custom_call.1} parent=11 // pred_region
          %262 = vsyncadd [#allocation7], 0
          %s263 = sshll.u32 %s1, 4
          %s264 = int_to_ptr.hbm [resolvable:$true] %s263
          %s265 = sshll.u32 [#allocation6], 4
          %s266 = int_to_ptr.vmem [resolvable:$true] %s265
          %271 = dma.hbm_to_vmem [thread:$0]  %s264, 256, %s266, [#allocation7], 64, 64, 4
        $region16: #{tpu_custom_call.1} parent=11 // pred_fallthru
          _
        // Predicated region
        $region17: #{tpu_custom_call.1} parent=11 // pred_check
          %p272 = pneg %p91
        $region18: #{tpu_custom_call.1} parent=11 // pred_check_branch
          %274 = sbr.rel (%p272) target = $region20
        $region19: #{tpu_custom_call.1} parent=11 // pred_region
          _
        $region20: #{tpu_custom_call.1} parent=11 // pred_fallthru
          _
        // Predicated region
        $region21: #{tpu_custom_call.1} parent=11 // pred_check
          %p275 = pneg %p112
        $region22: #{tpu_custom_call.1} parent=11 // pred_check_branch
          %277 = sbr.rel (%p275) target = $region24
        $region23: #{tpu_custom_call.1} parent=11 // pred_region
          %279 = vsyncadd [#allocation7], 0
          %s280 = sshll.u32 %s3, 4
          %s281 = int_to_ptr.hbm [resolvable:$true] %s280
          %s282 = sshll.u32 [#allocation8], 4
          %s283 = int_to_ptr.vmem [resolvable:$true] %s282
          %288 = dma.hbm_to_vmem [thread:$0]  %s281, 256, %s283, [#allocation7], 64, 64, 4
        $region24: #{tpu_custom_call.1} parent=11 // pred_fallthru
          _
        // Predicated region
        $region25: #{tpu_custom_call.1} parent=11 // pred_check
          %p289 = pneg %p133
        $region26: #{tpu_custom_call.1} parent=11 // pred_check_branch
          %291 = sbr.rel (%p289) target = $region28
        $region27: #{tpu_custom_call.1} parent=11 // pred_region
          _
        $region28: #{tpu_custom_call.1} parent=11 // pred_fallthru
          _
        // Predicated region
        $region29: #{tpu_custom_call.1} parent=11 // pred_check
          %p292 = pneg %p154
        $region30: #{tpu_custom_call.1} parent=11 // pred_check_branch
          %294 = sbr.rel (%p292) target = $region32
        $region31: #{tpu_custom_call.1} parent=11 // pred_region
          %296 = vsyncadd [#allocation10], 0
          %s297 = sshll.u32 %s5, 4
          %s298 = int_to_ptr.hbm [resolvable:$true] %s297
          %s299 = sshll.u32 [#allocation9], 4
          %s300 = int_to_ptr.vmem [resolvable:$true] %s299
          %305 = dma.hbm_to_vmem [thread:$0]  %s298, 256, %s300, [#allocation10], 64, 64, 4
        $region32: #{tpu_custom_call.1} parent=11 // pred_fallthru
          _
        // Predicated region
        $region33: #{tpu_custom_call.1} parent=11 // pred_check
          %p306 = pneg %p175
        $region34: #{tpu_custom_call.1} parent=11 // pred_check_branch
          %308 = sbr.rel (%p306) target = $region36
        $region35: #{tpu_custom_call.1} parent=11 // pred_region
          _
        $region36: #{tpu_custom_call.1} parent=11 // pred_fallthru
          _
        // Predicated region
        $region37: #{tpu_custom_call.1} parent=11 // pred_check
          %p309 = pneg %p196
        $region38: #{tpu_custom_call.1} parent=11 // pred_check_branch
          %311 = sbr.rel (%p309) target = $region40
        $region39: #{tpu_custom_call.1} parent=11 // pred_region
          _
        $region40: #{tpu_custom_call.1} parent=11 // pred_fallthru
          _
        // Predicated region
        $region41: #{tpu_custom_call.1} parent=11 // pred_check
          %p312 = pneg %p217
        $region42: #{tpu_custom_call.1} parent=11 // pred_check_branch
          %314 = sbr.rel (%p312) target = $region44
        $region43: #{tpu_custom_call.1} parent=11 // pred_region
          _
        $region44: #{tpu_custom_call.1} parent=11 // pred_fallthru
          _
      $region12: #{tpu_custom_call.1} parent=5 // pred_fallthru
        _
      %p315 = scmp.lt.s32.totalorder %s23, 2
      // Predicated region
      $region45: #{tpu_custom_call.1} parent=5 // pred_check
        %p316 = pneg %p315
      $region46: #{tpu_custom_call.1} parent=5 // pred_check_branch
        %318 = sbr.rel (%p316) target = $region48
      $region47: #{tpu_custom_call.1} parent=5 // pred_region
        // Predicated region
        $region49: #{tpu_custom_call.1} parent=47 // pred_check
          %p319 = pneg %p43
        $region50: #{tpu_custom_call.1} parent=47 // pred_check_branch
          %321 = sbr.rel (%p319) target = $region52
        $region51: #{tpu_custom_call.1} parent=47 // pred_region
          %s322 = sand.u32 %s33, 1
          %s323 = scalar_lea.sflag [#allocation4], %s322
          %s324 = sand.u32 %s33, 1
          %s325 = smul.addr %s324, 8
          %s326 = scalar_lea.vmem [#allocation3], %s325
          %328 = vsyncadd %s323, 0
          %s329 = smul.addr %s23, 8
          %s330 = scalar_lea.hbm %s0, %s329
          %s332 = sshll.u32 %s330, 4
          %s333 = int_to_ptr.hbm [resolvable:$true] %s332
          %s334 = sshll.u32 %s326, 4
          %s335 = int_to_ptr.vmem [resolvable:$true] %s334
          %337 = dma.hbm_to_vmem [thread:$0]  %s333, 128, %s335, %s323
        $region52: #{tpu_custom_call.1} parent=47 // pred_fallthru
          _
      $region48: #{tpu_custom_call.1} parent=5 // pred_fallthru
        _
      %p338 = scmp.le.s32.totalorder 1, %s23
      %p339 = scmp.lt.s32.totalorder %s23, 3
      %p340 = pnand %p338, %p339
      %p341 = pneg %p340
      // Predicated region
      $region53: #{tpu_custom_call.1} parent=5 // pred_check
        _
      $region54: #{tpu_custom_call.1} parent=5 // pred_check_branch
        %343 = sbr.rel (%p340) target = $region56
      $region55: #{tpu_custom_call.1} parent=5 // pred_region
        %s344 = ssub.s32 %s23, 1
        %s345 = sand.u32 %s36, 1
        %s346 = scalar_lea.sflag [#allocation4], %s345
        %s347 = sand.u32 %s36, 1
        %s348 = smul.addr %s347, 8
        %s349 = scalar_lea.vmem [#allocation3], %s348
        // Predicated region
        $region57: #{tpu_custom_call.1} parent=55 // pred_check
          %p350 = pneg %p49
        $region58: #{tpu_custom_call.1} parent=55 // pred_check_branch
          %352 = sbr.rel (%p350) target = $region60
        $region59: #{tpu_custom_call.1} parent=55 // pred_region
          %354 = dma.done %s346, 128
        $region60: #{tpu_custom_call.1} parent=55 // pred_fallthru
          _
        // Predicated region
        $region61: #{tpu_custom_call.1} parent=55 // pred_check
          %p355 = pneg %p70
        $region62: #{tpu_custom_call.1} parent=55 // pred_check_branch
          %357 = sbr.rel (%p355) target = $region64
        $region63: #{tpu_custom_call.1} parent=55 // pred_region
          %359 = dma.done [#allocation7], 256
        $region64: #{tpu_custom_call.1} parent=55 // pred_fallthru
          _
        // Predicated region
        $region65: #{tpu_custom_call.1} parent=55 // pred_check
          %p360 = pneg %p112
        $region66: #{tpu_custom_call.1} parent=55 // pred_check_branch
          %362 = sbr.rel (%p360) target = $region68
        $region67: #{tpu_custom_call.1} parent=55 // pred_region
          %364 = dma.done [#allocation7], 256
        $region68: #{tpu_custom_call.1} parent=55 // pred_fallthru
          _
        // Predicated region
        $region69: #{tpu_custom_call.1} parent=55 // pred_check
          %p365 = pneg %p154
        $region70: #{tpu_custom_call.1} parent=55 // pred_check_branch
          %367 = sbr.rel (%p365) target = $region72
        $region71: #{tpu_custom_call.1} parent=55 // pred_region
          %369 = dma.done [#allocation10], 256
        $region72: #{tpu_custom_call.1} parent=55 // pred_fallthru
          _
        %s370 = sand.u32 %s36, 1
        %s371 = scalar_lea.sflag [#allocation4], %s370
        %s372 = sand.u32 %s36, 1
        %s373 = smul.addr %s372, 8
        %s374 = scalar_lea.vmem [#allocation3], %s373
        %p375 = pneg %p49
        %p376 = pneg %p46
        %p377 = pneg %p70
        %p378 = pneg %p67
        %p379 = pneg %p91
        %p380 = pneg %p88
        %p381 = pneg %p112
        %p382 = pneg %p109
        %p383 = pneg %p133
        %p384 = pneg %p130
        %p385 = pneg %p154
        %p386 = pneg %p151
        %p387 = pneg %p175
        %p388 = pneg %p172
        %p389 = pneg %p196
        %p390 = pneg %p193
        %p391 = pneg %p217
        %p392 = pneg %p214
        %p393 = pneg %p243
        %p394 = pneg %p240
        %s395 = sand.u32 %s230, 1
        %s396 = scalar_lea.sflag [#allocation5], %s395
        %s397 = sand.u32 %s230, 1
        %s398 = smul.addr %s397, 8
        %s399 = scalar_lea.vmem [#allocation11], %s398
        %v401 = vld [vmem:[#allocation6] sm:$0xf]
        %v402 = vld [vmem:[#allocation6 + $0x4] sm:$0xf]
        %v403 = vld [vmem:[#allocation6 + $0x8] sm:$0xf]
        %v404 = vld [vmem:[#allocation6 + $0xc] sm:$0xf]
        %v405 = vld [vmem:[#allocation8] sm:$0xf]
        %v406 = vld [vmem:[#allocation8 + $0x4] sm:$0xf]
        %v407 = vld [vmem:[#allocation8 + $0x8] sm:$0xf]
        %v408 = vld [vmem:[#allocation8 + $0xc] sm:$0xf]
        %v409 = vld [vmem:[#allocation9] sm:$0xf]
        %v410 = vld [vmem:[#allocation9 + $0x4] sm:$0xf]
        %v411 = vld [vmem:[#allocation9 + $0x8] sm:$0xf]
        %v412 = vld [vmem:[#allocation9 + $0xc] sm:$0xf]
        %v413 = vld [vmem:[%s2] sm:$0x1]
        %v415 = vperm.slane %v413, 0
        %v417 = vld [vmem:[%s4] sm:$0x1]
        %v419 = vperm.slane %v417, 0
        %v421 = vld [vmem:[%s6] sm:$0x1]
        %v423 = vperm.slane %v421, 0
        %v425 = vld [vmem:[%s7] sm:$0x1]
        %v427 = vperm.slane %v425, 0
        %v429 = vld [vmem:[%s8] sm:$0x1]
        %v431 = vperm.slane %v429, 0
        %v433 = vld [vmem:[%s349] sm:$0xff]
        %v434 = vpack.c.bf16 %v433, %v433
        %v439 = vunpack.c.l.b16 %v401
        %v440 = vunpack.c.l.b16 %v402
        %v441 = vunpack.c.l.b16 %v403
        %v442 = vunpack.c.l.b16 %v404
        %v443 = vpack.c.b16 %v440, %v439
        %v444 = vpack.c.b16 %v442, %v441
        %vm447 = vcmask 261120
        %v449 = vsel %vm447, %v434, 0
        %451 = vmatpush.bf16.msra.mxu0 0
        %452 = vmatpush.bf16.msra.mxu0 0
        %453 = vmatpush.bf16.msra.mxu0 0
        %454 = vmatpush.bf16.msra.mxu0 0
        %455 = vmatpush.bf16.msra.mxu0 0
        %456 = vmatpush.bf16.msra.mxu0 0
        %457 = vmatpush.bf16.msra.mxu0 %v444
        %458 = vmatpush.bf16.msra.mxu0 %v443
        %459 = vmatmul.bf16.gmra.mxu0 %v449
        %v460 = vpop.f32.mrf.mxu0
        %v461 = vadd.f32 %v415, %v460
        %v462 = vpop.f32.mrf.mxu0
        %463 = vdwg.mxu0
        %v464 = vpack.c.bf16 %v461, %v461
        %466 = vrot.lane.b32.xlu0 %v464, 96
        %v467 = vpop.permute.xlu0 %466
        %vm468 = vcmask 64512
        %v470 = vsel %vm468, %v464, 0
        %v473 = vsel %vm468, %v467, 0
        %475 = vmatpush.bf16.xpose.msra.mxu0 0
        %476 = vmatpush.bf16.xpose.msra.mxu0 0
        %477 = vmatpush.bf16.xpose.msra.mxu0 0
        %478 = vmatpush.bf16.xpose.msra.mxu0 0
        %479 = vmatpush.bf16.xpose.msra.mxu0 0
        %480 = vmatpush.bf16.xpose.msra.mxu0 0
        %481 = vmatpush.bf16.xpose.msra.mxu0 0
        %482 = vmatpush.bf16.xpose.msra.mxu0 %v473
        %483 = vmatmul.bf16.gmra.mxu0 %v470
        %v484 = vpop.f32.mrf.mxu0
        %v485 = vadd.f32 0.0, %v484
        %v486 = vpop.f32.mrf.mxu0
        %487 = vdwg.mxu0
        %v488 = vmul.f32 %v485, 0.35355338
        %v489 = vsel %vm468, %v488, -inf
        %490 = vmax.xlane.f32.xlu0 %v489
        %v491 = vpop.xlane.xlu0 %490
        %v492 = vsub.f32 %v488, %v491
        %v493 = vmul.f32 %v492, 1.442695
        %v494 = vpow.pop %v493
        %v495 = vsel %vm468, %v494, 0.0
        %496 = vadd.xlane.f32.xlu0 %v495
        %v497 = vpop.xlane.xlu0 %496
        %v498 = vrcp.pop %v497
        %v499 = vmul.f32 %v494, %v498
        %v500 = vpack.c.bf16 %v499, %v499
        %501 = vrot.lane.b32.xlu0 %v464, 64
        %v502 = vpop.permute.xlu0 %501
        %v504 = vsel %vm468, %v500, 0
        %vm506 = vcmask 1043456
        %v508 = vsel %vm506, %v502, 0
        %510 = vmatpush.bf16.msra.mxu0 0
        %511 = vmatpush.bf16.msra.mxu0 0
        %512 = vmatpush.bf16.msra.mxu0 0
        %513 = vmatpush.bf16.msra.mxu0 0
        %514 = vmatpush.bf16.msra.mxu0 0
        %515 = vmatpush.bf16.msra.mxu0 0
        %516 = vmatpush.bf16.msra.mxu0 0
        %517 = vmatpush.bf16.msra.mxu0 %v508
        %518 = vmatmul.bf16.gmra.mxu0 %v504
        %v519 = vpop.f32.mrf.mxu0
        %v520 = vadd.f32 0.0, %v519
        %v521 = vpop.f32.mrf.mxu0
        %522 = vdwg.mxu0
        %523 = vst.msk [vmem:[#allocation2] sm:$0xff] %vm468, %v520
        %524 = vrot.lane.b32.xlu0 %v464, 120
        %v525 = vpop.permute.xlu0 %524
        %526 = vrot.lane.b32.xlu0 %v464, 88
        %v527 = vpop.permute.xlu0 %526
        %v529 = vsel %vm468, %v525, 0
        %v532 = vsel %vm468, %v527, 0
        %534 = vmatpush.bf16.xpose.msra.mxu0 0
        %535 = vmatpush.bf16.xpose.msra.mxu0 0
        %536 = vmatpush.bf16.xpose.msra.mxu0 0
        %537 = vmatpush.bf16.xpose.msra.mxu0 0
        %538 = vmatpush.bf16.xpose.msra.mxu0 0
        %539 = vmatpush.bf16.xpose.msra.mxu0 0
        %540 = vmatpush.bf16.xpose.msra.mxu0 0
        %541 = vmatpush.bf16.xpose.msra.mxu0 %v532
        %542 = vmatmul.bf16.gmra.mxu0 %v529
        %v543 = vpop.f32.mrf.mxu0
        %v544 = vadd.f32 0.0, %v543
        %v545 = vpop.f32.mrf.mxu0
        %546 = vdwg.mxu0
        %v547 = vmul.f32 %v544, 0.35355338
        %v548 = vsel %vm468, %v547, -inf
        %549 = vmax.xlane.f32.xlu0 %v548
        %v550 = vpop.xlane.xlu0 %549
        %v551 = vsub.f32 %v547, %v550
        %v552 = vmul.f32 %v551, 1.442695
        %v553 = vpow.pop %v552
        %v554 = vsel %vm468, %v553, 0.0
        %555 = vadd.xlane.f32.xlu0 %v554
        %v556 = vpop.xlane.xlu0 %555
        %v557 = vrcp.pop %v556
        %v558 = vmul.f32 %v553, %v557
        %v559 = vpack.c.bf16 %v558, %v558
        %560 = vrot.lane.b32.xlu0 %v464, 56
        %v561 = vpop.permute.xlu0 %560
        %v563 = vsel %vm468, %v559, 0
        %v566 = vsel %vm506, %v561, 0
        %568 = vmatpush.bf16.msra.mxu0 0
        %569 = vmatpush.bf16.msra.mxu0 0
        %570 = vmatpush.bf16.msra.mxu0 0
        %571 = vmatpush.bf16.msra.mxu0 0
        %572 = vmatpush.bf16.msra.mxu0 0
        %573 = vmatpush.bf16.msra.mxu0 0
        %574 = vmatpush.bf16.msra.mxu0 0
        %575 = vmatpush.bf16.msra.mxu0 %v566
        %576 = vmatmul.bf16.gmra.mxu0 %v563
        %v577 = vpop.f32.mrf.mxu0
        %v578 = vadd.f32 0.0, %v577
        %v579 = vpop.f32.mrf.mxu0
        %580 = vdwg.mxu0
        %582 = vrot.lane.b32.xlu0 %v578, 8
        %v583 = vpop.permute.xlu0 %582
        %vm585 = vcmask 130112
        %586 = vst.msk [vmem:[#allocation2] sm:$0xff] %vm585, %v583
        %587 = vrot.lane.b32.xlu0 %v464, 112
        %v588 = vpop.permute.xlu0 %587
        %589 = vrot.lane.b32.xlu0 %v464, 80
        %v590 = vpop.permute.xlu0 %589
        %v592 = vsel %vm468, %v588, 0
        %v595 = vsel %vm468, %v590, 0
        %597 = vmatpush.bf16.xpose.msra.mxu0 0
        %598 = vmatpush.bf16.xpose.msra.mxu0 0
        %599 = vmatpush.bf16.xpose.msra.mxu0 0
        %600 = vmatpush.bf16.xpose.msra.mxu0 0
        %601 = vmatpush.bf16.xpose.msra.mxu0 0
        %602 = vmatpush.bf16.xpose.msra.mxu0 0
        %603 = vmatpush.bf16.xpose.msra.mxu0 0
        %604 = vmatpush.bf16.xpose.msra.mxu0 %v595
        %605 = vmatmul.bf16.gmra.mxu0 %v592
        %v606 = vpop.f32.mrf.mxu0
        %v607 = vadd.f32 0.0, %v606
        %v608 = vpop.f32.mrf.mxu0
        %609 = vdwg.mxu0
        %v610 = vmul.f32 %v607, 0.35355338
        %v611 = vsel %vm468, %v610, -inf
        %612 = vmax.xlane.f32.xlu0 %v611
        %v613 = vpop.xlane.xlu0 %612
        %v614 = vsub.f32 %v610, %v613
        %v615 = vmul.f32 %v614, 1.442695
        %v616 = vpow.pop %v615
        %v617 = vsel %vm468, %v616, 0.0
        %618 = vadd.xlane.f32.xlu0 %v617
        %v619 = vpop.xlane.xlu0 %618
        %v620 = vrcp.pop %v619
        %v621 = vmul.f32 %v616, %v620
        %v622 = vpack.c.bf16 %v621, %v621
        %623 = vrot.lane.b32.xlu0 %v464, 48
        %v624 = vpop.permute.xlu0 %623
        %v626 = vsel %vm468, %v622, 0
        %v629 = vsel %vm506, %v624, 0
        %631 = vmatpush.bf16.msra.mxu0 0
        %632 = vmatpush.bf16.msra.mxu0 0
        %633 = vmatpush.bf16.msra.mxu0 0
        %634 = vmatpush.bf16.msra.mxu0 0
        %635 = vmatpush.bf16.msra.mxu0 0
        %636 = vmatpush.bf16.msra.mxu0 0
        %637 = vmatpush.bf16.msra.mxu0 0
        %638 = vmatpush.bf16.msra.mxu0 %v629
        %639 = vmatmul.bf16.gmra.mxu0 %v626
        %v640 = vpop.f32.mrf.mxu0
        %v641 = vadd.f32 0.0, %v640
        %v642 = vpop.f32.mrf.mxu0
        %643 = vdwg.mxu0
        %645 = vrot.lane.b32.xlu0 %v641, 16
        %v646 = vpop.permute.xlu0 %645
        %vm648 = vcmask 195712
        %649 = vst.msk [vmem:[#allocation2] sm:$0xff] %vm648, %v646
        %650 = vrot.lane.b32.xlu0 %v464, 104
        %v651 = vpop.permute.xlu0 %650
        %652 = vrot.lane.b32.xlu0 %v464, 72
        %v653 = vpop.permute.xlu0 %652
        %v655 = vsel %vm468, %v651, 0
        %v658 = vsel %vm468, %v653, 0
        %660 = vmatpush.bf16.xpose.msra.mxu0 0
        %661 = vmatpush.bf16.xpose.msra.mxu0 0
        %662 = vmatpush.bf16.xpose.msra.mxu0 0
        %663 = vmatpush.bf16.xpose.msra.mxu0 0
        %664 = vmatpush.bf16.xpose.msra.mxu0 0
        %665 = vmatpush.bf16.xpose.msra.mxu0 0
        %666 = vmatpush.bf16.xpose.msra.mxu0 0
        %667 = vmatpush.bf16.xpose.msra.mxu0 %v658
        %668 = vmatmul.bf16.gmra.mxu0 %v655
        %v669 = vpop.f32.mrf.mxu0
        %v670 = vadd.f32 0.0, %v669
        %v671 = vpop.f32.mrf.mxu0
        %672 = vdwg.mxu0
        %v673 = vmul.f32 %v670, 0.35355338
        %v674 = vsel %vm468, %v673, -inf
        %675 = vmax.xlane.f32.xlu0 %v674
        %v676 = vpop.xlane.xlu0 %675
        %v677 = vsub.f32 %v673, %v676
        %v678 = vmul.f32 %v677, 1.442695
        %v679 = vpow.pop %v678
        %v680 = vsel %vm468, %v679, 0.0
        %681 = vadd.xlane.f32.xlu0 %v680
        %v682 = vpop.xlane.xlu0 %681
        %v683 = vrcp.pop %v682
        %v684 = vmul.f32 %v679, %v683
        %v685 = vpack.c.bf16 %v684, %v684
        %686 = vrot.lane.b32.xlu0 %v464, 40
        %v687 = vpop.permute.xlu0 %686
        %v689 = vsel %vm468, %v685, 0
        %v692 = vsel %vm506, %v687, 0
        %694 = vmatpush.bf16.msra.mxu0 0
        %695 = vmatpush.bf16.msra.mxu0 0
        %696 = vmatpush.bf16.msra.mxu0 0
        %697 = vmatpush.bf16.msra.mxu0 0
        %698 = vmatpush.bf16.msra.mxu0 0
        %699 = vmatpush.bf16.msra.mxu0 0
        %700 = vmatpush.bf16.msra.mxu0 0
        %701 = vmatpush.bf16.msra.mxu0 %v692
        %702 = vmatmul.bf16.gmra.mxu0 %v689
        %v703 = vpop.f32.mrf.mxu0
        %v704 = vadd.f32 0.0, %v703
        %v705 = vpop.f32.mrf.mxu0
        %706 = vdwg.mxu0
        %708 = vrot.lane.b32.xlu0 %v704, 24
        %v709 = vpop.permute.xlu0 %708
        %vm711 = vcmask 261312
        %712 = vst.msk [vmem:[#allocation2] sm:$0xff] %vm711, %v709
        %v713 = vld [vmem:[#allocation2] sm:$0xff]
        %v714 = vpack.c.bf16 %v713, %v713
        %v719 = vunpack.c.l.b16 %v405
        %v720 = vunpack.c.l.b16 %v406
        %v721 = vunpack.c.l.b16 %v407
        %v722 = vunpack.c.l.b16 %v408
        %v723 = vpack.c.b16 %v720, %v719
        %v724 = vpack.c.b16 %v722, %v721
        %v728 = vsel %vm447, %v714, 0
        %730 = vmatpush.bf16.msra.mxu0 0
        %731 = vmatpush.bf16.msra.mxu0 0
        %732 = vmatpush.bf16.msra.mxu0 0
        %733 = vmatpush.bf16.msra.mxu0 0
        %734 = vmatpush.bf16.msra.mxu0 0
        %735 = vmatpush.bf16.msra.mxu0 0
        %736 = vmatpush.bf16.msra.mxu0 %v724
        %737 = vmatpush.bf16.msra.mxu0 %v723
        %738 = vmatmul.bf16.gmra.mxu0 %v728
        %v739 = vpop.f32.mrf.mxu0
        %v740 = vadd.f32 %v419, %v739
        %v741 = vpop.f32.mrf.mxu0
        %742 = vdwg.mxu0
        %v743 = vadd.f32 %v740, %v433
        %v744 = vsel %vm447, %v743, 0.0
        %745 = vadd.xlane.f32.xlu0 %v744
        %v746 = vpop.xlane.xlu0 %745
        %v747 = vrcp.pop 32.0
        %v748 = vmul.f32 32.0, %v747
        %v749 = vsub.f32 1.0, %v748
        %v750 = vmul.f32 %v747, %v749
        %v751 = vadd.f32 %v747, %v750
        %vm752 = vweird.f32 %v747
        %v753 = vsel %vm752, %v747, %v751
        %v754 = vmul.f32 %v746, %v753
        %v755 = vsub.f32 %v743, %v754
        %v756 = vmul.f32 %v755, %v755
        %v757 = vsel %vm447, %v756, 0.0
        %758 = vadd.xlane.f32.xlu0 %v757
        %v759 = vpop.xlane.xlu0 %758
        %v760 = vmul.f32 %v759, %v753
        %v761 = vadd.f32 %v760, 1e-05
        %v762 = vrsqrt.pop %v761
        %v763 = vmul.f32 %v762, %v761
        %v764 = vmul.f32 %v763, %v762
        %v765 = vmul.f32 0.5, %v764
        %v766 = vsub.f32 1.5, %v765
        %v767 = vmul.f32 %v762, %v766
        %vm768 = vweird.f32 %v761
        %vm769 = vweird.f32 %v762
        %vm770 = vmor %vm768, %vm769
        %v771 = vsel %vm770, %v762, %v767
        %v772 = vmul.f32 %v755, %v771
        %v773 = vmul.f32 %v772, %v427
        %v774 = vadd.f32 %v773, %v431
        %v775 = vpack.c.bf16 %v774, %v774
        %v780 = vunpack.c.l.b16 %v409
        %v781 = vunpack.c.l.b16 %v410
        %v782 = vunpack.c.l.b16 %v411
        %v783 = vunpack.c.l.b16 %v412
        %v784 = vpack.c.b16 %v781, %v780
        %v785 = vpack.c.b16 %v783, %v782
        %v789 = vsel %vm447, %v775, 0
        %791 = vmatpush.bf16.msra.mxu0 0
        %792 = vmatpush.bf16.msra.mxu0 0
        %793 = vmatpush.bf16.msra.mxu0 0
        %794 = vmatpush.bf16.msra.mxu0 0
        %795 = vmatpush.bf16.msra.mxu0 0
        %796 = vmatpush.bf16.msra.mxu0 0
        %797 = vmatpush.bf16.msra.mxu0 %v785
        %798 = vmatpush.bf16.msra.mxu0 %v784
        %799 = vmatmul.bf16.gmra.mxu0 %v789
        %v800 = vpop.f32.mrf.mxu0
        %v801 = vadd.f32 0.0, %v800
        %v802 = vpop.f32.mrf.mxu0
        %803 = vdwg.mxu0
        %v804 = vadd.f32 %v774, %v801
        %v805 = vadd.f32 %v804, %v423
        %v806 = vsel %vm447, %v805, 0.0
        %807 = vadd.xlane.f32.xlu0 %v806
        %v808 = vpop.xlane.xlu0 %807
        %v809 = vmul.f32 %v808, %v753
        %v810 = vsub.f32 %v805, %v809
        %v811 = vmul.f32 %v810, %v810
        %v812 = vsel %vm447, %v811, 0.0
        %813 = vadd.xlane.f32.xlu0 %v812
        %v814 = vpop.xlane.xlu0 %813
        %v815 = vmul.f32 %v814, %v753
        %v816 = vadd.f32 %v815, 1e-05
        %v817 = vrsqrt.pop %v816
        %v818 = vmul.f32 %v817, %v816
        %v819 = vmul.f32 %v818, %v817
        %v820 = vmul.f32 0.5, %v819
        %v821 = vsub.f32 1.5, %v820
        %v822 = vmul.f32 %v817, %v821
        %vm823 = vweird.f32 %v816
        %vm824 = vweird.f32 %v817
        %vm825 = vmor %vm823, %vm824
        %v826 = vsel %vm825, %v817, %v822
        %v827 = vmul.f32 %v810, %v826
        %v828 = vmul.f32 %v827, %v427
        %v829 = vadd.f32 %v828, %v431
        %830 = vst.msk [vmem:[%s399] sm:$0xff] %vm447, %v829
        %s831 = sand.u32 %s230, 1
        %s832 = scalar_lea.sflag [#allocation5], %s831
        %s833 = sand.u32 %s230, 1
        %s834 = smul.addr %s833, 8
        %s835 = scalar_lea.vmem [#allocation11], %s834
        // Predicated region
        $region73: #{tpu_custom_call.1} parent=55 // pred_check
          %p836 = pneg %p240
        $region74: #{tpu_custom_call.1} parent=55 // pred_check_branch
          %838 = sbr.rel (%p836) target = $region76
        $region75: #{tpu_custom_call.1} parent=55 // pred_region
          %840 = vsyncadd %s832, 0
          %s841 = smul.addr %s28, 8
          %s842 = scalar_lea.hbm %s9, %s841
          %s844 = sshll.u32 %s835, 4
          %s845 = int_to_ptr.vmem [resolvable:$true] %s844
          %s846 = sshll.u32 %s842, 4
          %s847 = int_to_ptr.hbm [resolvable:$true] %s846
          %849 = dma.vmem_to_hbm [thread:$0]  %s845, 128, %s847, %s832
        $region76: #{tpu_custom_call.1} parent=55 // pred_fallthru
          _
      $region56: #{tpu_custom_call.1} parent=5 // pred_fallthru
        _
      %p850 = scmp.le.s32.totalorder 2, %s23
      // Predicated region
      $region77: #{tpu_custom_call.1} parent=5 // pred_check
        %p851 = pneg %p850
      $region78: #{tpu_custom_call.1} parent=5 // pred_check_branch
        %853 = sbr.rel (%p851) target = $region80
      $region79: #{tpu_custom_call.1} parent=5 // pred_region
        %s854 = ssub.s32 %s23, 2
        // Predicated region
        $region81: #{tpu_custom_call.1} parent=79 // pred_check
          %p855 = pneg %p246
        $region82: #{tpu_custom_call.1} parent=79 // pred_check_branch
          %857 = sbr.rel (%p855) target = $region84
        $region83: #{tpu_custom_call.1} parent=79 // pred_region
          %s858 = sand.u32 %s231, 1
          %s859 = scalar_lea.sflag [#allocation5], %s858
          %s860 = sand.u32 %s231, 1
          %s861 = smul.addr %s860, 8
          %s862 = scalar_lea.vmem [#allocation11], %s861
          %864 = dma.done %s859, 128
        $region84: #{tpu_custom_call.1} parent=79 // pred_fallthru
          _
      $region80: #{tpu_custom_call.1} parent=5 // pred_fallthru
        _
    $region6: #{tpu_custom_call.1} parent=1 // loop_footer
      %s27 = sadd.s32 1, %s23
    $region7: #{tpu_custom_call.1} parent=1 // loop_footer_branch
      %22 = sbr.rel target = $region3
    $region8: #{tpu_custom_call.1} parent=1 // loop_exit
      _
    %865 = vsyncpa [#allocation4], 1
    %s866 = scalar_lea.sflag [#allocation4], 1
    %867 = vsyncpa %s866, 1
    %868 = vsyncpa [#allocation7], 1
    %869 = vsyncpa [#allocation10], 1
    %870 = vsyncpa [#allocation5], 1
    %s871 = scalar_lea.sflag [#allocation5], 1
    %872 = vsyncpa %s871, 1

</llo_original>
